<compile_context>
chip_gen: v7x
topology: tpu7x:2x2x1
jax: 0.10.0
libtpu: 0.0.40
codegen_flags: <defaults>
</compile_context>

<pallas_src>
import functools
import math

import jax
import jax.numpy as jnp
from jax.experimental import pallas as pl
from jax.experimental.pallas import tpu as pltpu


def _round_up(x, m):
    return (x + m - 1) // m * m


def _vmem_limit_and_budget():
    """Per-core VMEM limit for the compiler and a (smaller) planning budget for tiling."""
    cap = 64 * 1024 * 1024  # conservative fallback (v7x per-TC physical VMEM)
    try:
        info = pltpu.get_tpu_info()
        cap = int(getattr(info, "vmem_capacity_bytes", cap))
    except Exception:
        pass
    limit = (cap * 3) // 4          # leave headroom for compiler-internal scratch
    budget = (limit * 7) // 8       # planning budget used for tile sizing
    return int(limit), int(budget)


def _choose_tile_m(m, cin, tn, r_pad, itemsize, budget):
    """Largest M tile whose per-step VMEM footprint fits the budget.

    Accounts for double-buffered DMA tiles at the real input itemsize plus the in-kernel
    f32 temporaries and the xa scratch.
    """
    fixed = (
        2 * cin * r_pad * itemsize      # lora_A^T (constant index; 2x is conservative)
        + 2 * cin * tn * itemsize       # W^T tile (double-buffered)
        + 2 * r_pad * tn * itemsize     # scaled lora_B^T tile (double-buffered)
        + 2 * tn * 4                    # f32 bias tile (double-buffered)
    )
    per_row = (
        2 * cin * itemsize              # x tile (double-buffered)
        + 2 * tn * itemsize             # out tile (double-buffered)
        + r_pad * itemsize              # xa scratch
        + tn * 4                        # f32 accumulator temporary
    )
    tm = (budget - fixed) // max(per_row, 1)
    tm = int(max(8, min(tm, 512)))
    if tm >= 256:
        tm = (tm // 256) * 256          # 256-aligned M tiles (v6e/v7x MXU)
    else:
        tm = (tm // 8) * 8
    tm = min(tm, _round_up(m, 8))
    return max(tm, 8)


def _lora_linear_kernel(x_ref, wt_ref, b_ref, at_ref, bt_ref, out_ref, xa_ref):
    """Per (M tile, Cout tile): out = x @ W^T + b + (x @ A^T) @ (B^T * scaling)."""
    # The (TM, r_pad) LoRA activation depends only on the M tile: compute it once per
    # M tile (Cout-tile index 0) and reuse it from VMEM scratch across the Cout sweep.
    @pl.when(pl.program_id(1) == 0)
    def _():
        xa_ref[...] = jnp.dot(
            x_ref[...], at_ref[...], preferred_element_type=jnp.float32
        ).astype(xa_ref.dtype)

    acc = jnp.dot(x_ref[...], wt_ref[...], preferred_element_type=jnp.float32)
    acc = acc + jnp.dot(xa_ref[...], bt_ref[...], preferred_element_type=jnp.float32)
    out_ref[...] = (acc + b_ref[...]).astype(out_ref.dtype)


@functools.partial(jax.jit, static_argnames=("scaling",))
def lora_linear_forward(x, W, b, A, Bm, scaling):
    """x: (..., Cin). W: (Cout, Cin). b: (Cout,). A: (r, Cin). Bm: (Cout, r)."""
    *lead, cin = x.shape
    cout = W.shape[0]
    r = A.shape[0]
    m = int(math.prod(lead)) if lead else 1

    itemsize = jnp.dtype(x.dtype).itemsize
    cout_p = _round_up(cout, 256)           # 256-aligned, lane-dense output stores
    r_pad = _round_up(r, 128)               # lane-dense xa intermediate
    tn = min(cout_p, 256)

    vmem_limit, budget = _vmem_limit_and_budget()
    tm = _choose_tile_m(m, cin, tn, r_pad, itemsize, budget)
    m_pad = _round_up(m, tm)

    # --- wrapper-side layout plumbing (one-time, amortized) ---
    x2 = x.reshape(m, cin)
    if m_pad != m:
        x2 = jnp.pad(x2, ((0, m_pad - m), (0, 0)))
    pad_o = cout_p - cout
    Wt = jnp.pad(W, ((0, pad_o), (0, 0))).T                               # (Cin, Cout_p)
    bp = jnp.pad(b, (0, pad_o)).astype(jnp.float32).reshape(1, cout_p)    # f32 bias
    At = jnp.pad(A, ((0, r_pad - r), (0, 0))).T                           # (Cin, r_pad)
    Bmt = jnp.pad(Bm * scaling, ((0, pad_o), (0, r_pad - r))).T           # (r_pad, Cout_p)

    grid = (m_pad // tm, cout_p // tn)

    flops = (
        2 * m_pad * cin * cout_p          # main projection
        + 2 * m_pad * cin * r_pad         # x @ A^T (once per M tile)
        + 2 * m_pad * r_pad * cout_p      # xa @ B^T
        + 2 * m_pad * cout_p              # bias + LoRA add
    )
    bytes_accessed = (
        m_pad * cin + cin * cout_p + cin * r_pad + r_pad * cout_p + m_pad * cout_p
    ) * itemsize + cout_p * 4

    out = pl.pallas_call(
        _lora_linear_kernel,
        out_shape=jax.ShapeDtypeStruct((m_pad, cout_p), x.dtype),
        grid=grid,
        in_specs=[
            pl.BlockSpec((tm, cin), lambda i, j: (i, 0)),      # x tile: resident over j
            pl.BlockSpec((cin, tn), lambda i, j: (0, j)),      # W^T tile
            pl.BlockSpec((1, tn), lambda i, j: (0, j)),        # f32 bias tile
            pl.BlockSpec((cin, r_pad), lambda i, j: (0, 0)),   # lora_A^T (resident, small)
            pl.BlockSpec((r_pad, tn), lambda i, j: (0, j)),    # scaled lora_B^T tile
        ],
        out_specs=pl.BlockSpec((tm, tn), lambda i, j: (i, j)),
        scratch_shapes=[pltpu.VMEM((tm, r_pad), x.dtype)],     # cached xa per M tile
        compiler_params=pltpu.CompilerParams(
            dimension_semantics=("parallel", "arbitrary"),
            vmem_limit_bytes=vmem_limit,
        ),
        cost_estimate=pl.CostEstimate(
            flops=flops, transcendentals=0, bytes_accessed=bytes_accessed
        ),
    )(x2, Wt, bp, At, Bmt)

    out = out[:m, :cout]
    return out.reshape(*lead, cout)


def _reference_forward(x, W, b, A, Bm, scaling):
    pre = jnp.einsum("bnc,oc->bno", x, W) + b
    lora = jnp.einsum("bnr,or->bno", jnp.einsum("bnc,rc->bnr", x, A), Bm) * scaling
    return pre + lora


if __name__ == "__main__":
    # Small shapes consistent with the module: batch=2, seq=16, hidden=32, rank=8.
    Bsz, N = 2, 16
    in_features, out_features = 32, 32
    r, lora_alpha = 8, 16
    scaling = lora_alpha / r

    key = jax.random.PRNGKey(0)
    kx, kw, kb, ka, kbm = jax.random.split(key, 5)

    x = jax.random.normal(kx, (Bsz, N, in_features), dtype=jnp.float32)
    W = jax.random.normal(kw, (out_features, in_features), dtype=jnp.float32) * 0.05
    b = jax.random.normal(kb, (out_features,), dtype=jnp.float32) * 0.01
    # lora_A: kaiming-uniform-like; lora_B is zero-init in the module but randomized here
    # so the LoRA branch is numerically exercised.
    A = jax.random.uniform(ka, (r, in_features), dtype=jnp.float32, minval=-0.2, maxval=0.2)
    Bm = jax.random.normal(kbm, (out_features, r), dtype=jnp.float32) * 0.1

    out = lora_linear_forward(x, W, b, A, Bm, scaling)
    out = jax.block_until_ready(out)

    ref = _reference_forward(x, W, b, A, Bm, scaling)

    assert out.shape == (Bsz, N, out_features)
    assert jnp.allclose(out, ref, atol=2e-4, rtol=2e-4)

    print("KERNEL_OK")
</pallas_src>

<mosaic_0001>
module attributes {stable_mosaic.version = 11 : i64} {
  func.func @_lora_linear_kernel(%arg0: i32, %arg1: i32, %arg2: memref<32x32xf32, #tpu.memory_space<vmem>>, %arg3: memref<32x256xf32, #tpu.memory_space<vmem>>, %arg4: memref<1x256xf32, #tpu.memory_space<vmem>>, %arg5: memref<32x128xf32, #tpu.memory_space<vmem>>, %arg6: memref<128x256xf32, #tpu.memory_space<vmem>>, %arg7: memref<32x256xf32, #tpu.memory_space<vmem>>, %arg8: memref<32x128xf32, #tpu.memory_space<vmem>>) attributes {dimension_semantics = [#tpu.dimension_semantics<parallel>, #tpu.dimension_semantics<arbitrary>], iteration_bounds = array<i64: 1, 1>, scalar_prefetch = 0 : i64, scratch_operands = 1 : i64, tpu.core_type = #tpu.core_type<tc>, window_params = [{transform_indices = @transform_0, window_bounds = array<i64: 32, 32>}, {transform_indices = @transform_1, window_bounds = array<i64: 32, 256>}, {transform_indices = @transform_2, window_bounds = array<i64: 1, 256>}, {pipeline_mode = #tpu.pipeline_mode<synchronous>, transform_indices = @transform_3, window_bounds = array<i64: 32, 128>}, {transform_indices = @transform_4, window_bounds = array<i64: 128, 256>}, {transform_indices = @transform_5, window_bounds = array<i64: 32, 256>}]} {
    %c0_i32 = arith.constant 0 : i32
    %0 = arith.cmpi eq, %arg1, %c0_i32 : i32
    %1 = arith.extui %0 : i1 to i32
    %c0_i32_0 = arith.constant 0 : i32
    %2 = arith.cmpi ne, %1, %c0_i32_0 : i32
    scf.if %2 {
      %c0_13 = arith.constant 0 : index
      %c0_14 = arith.constant 0 : index
      %14 = vector.load %arg2[%c0_13, %c0_14] : memref<32x32xf32, #tpu.memory_space<vmem>>, vector<32x32xf32>
      %c0_15 = arith.constant 0 : index
      %c0_16 = arith.constant 0 : index
      %15 = vector.load %arg5[%c0_15, %c0_16] : memref<32x128xf32, #tpu.memory_space<vmem>>, vector<32x128xf32>
      %cst_17 = arith.constant dense<0.000000e+00> : vector<32x128xf32>
      %16 = tpu.matmul %14, %15, %cst_17 {dimension_numbers = #tpu.dot_dimension_numbers<[1], [0], [0], [1], [0, 0, 1, 1], [], []>} : vector<32x32xf32>, vector<32x128xf32>, vector<32x128xf32> -> vector<32x128xf32>
      %c0_18 = arith.constant 0 : index
      %c0_19 = arith.constant 0 : index
      %17 = vector.load %arg8[%c0_18, %c0_19] : memref<32x128xf32, #tpu.memory_space<vmem>>, vector<32x128xf32>
      tpu.vector_store %arg8[%c0_18, %c0_19], %16 {strides = array<i32>} : memref<32x128xf32, #tpu.memory_space<vmem>>, vector<32x128xf32>,
    } else {
    }
    %c0 = arith.constant 0 : index
    %c0_1 = arith.constant 0 : index
    %3 = vector.load %arg2[%c0, %c0_1] : memref<32x32xf32, #tpu.memory_space<vmem>>, vector<32x32xf32>
    %c0_2 = arith.constant 0 : index
    %c0_3 = arith.constant 0 : index
    %4 = vector.load %arg3[%c0_2, %c0_3] : memref<32x256xf32, #tpu.memory_space<vmem>>, vector<32x256xf32>
    %cst = arith.constant dense<0.000000e+00> : vector<32x256xf32>
    %5 = tpu.matmul %3, %4, %cst {dimension_numbers = #tpu.dot_dimension_numbers<[1], [0], [0], [1], [0, 0, 1, 1], [], []>} : vector<32x32xf32>, vector<32x256xf32>, vector<32x256xf32> -> vector<32x256xf32>
    %c0_4 = arith.constant 0 : index
    %c0_5 = arith.constant 0 : index
    %6 = vector.load %arg8[%c0_4, %c0_5] : memref<32x128xf32, #tpu.memory_space<vmem>>, vector<32x128xf32>
    %c0_6 = arith.constant 0 : index
    %c0_7 = arith.constant 0 : index
    %7 = vector.load %arg6[%c0_6, %c0_7] : memref<128x256xf32, #tpu.memory_space<vmem>>, vector<128x256xf32>
    %cst_8 = arith.constant dense<0.000000e+00> : vector<32x256xf32>
    %8 = tpu.matmul %6, %7, %cst_8 {dimension_numbers = #tpu.dot_dimension_numbers<[1], [0], [0], [1], [0, 0, 1, 1], [], []>} : vector<32x128xf32>, vector<128x256xf32>, vector<32x256xf32> -> vector<32x256xf32>
    %9 = arith.addf %5, %8 : vector<32x256xf32>
    %c0_9 = arith.constant 0 : index
    %c0_10 = arith.constant 0 : index
    %10 = vector.load %arg4[%c0_9, %c0_10] : memref<1x256xf32, #tpu.memory_space<vmem>>, vector<1x256xf32>
    %11 = vector.broadcast %10 : vector<1x256xf32> to vector<32x256xf32>
    %12 = arith.addf %9, %11 : vector<32x256xf32>
    %c0_11 = arith.constant 0 : index
    %c0_12 = arith.constant 0 : index
    %13 = vector.load %arg7[%c0_11, %c0_12] : memref<32x256xf32, #tpu.memory_space<vmem>>, vector<32x256xf32>
    tpu.vector_store %arg7[%c0_11, %c0_12], %12 {strides = array<i32>} : memref<32x256xf32, #tpu.memory_space<vmem>>, vector<32x256xf32>,
    return
  }
  func.func @transform_0(%arg0: i32, %arg1: i32) -> (i32, i32) {
    %c0_i32 = arith.constant 0 : i32
    %c0_i32_0 = arith.constant 0 : i32
    return %arg0, %c0_i32 : i32, i32
  }
  func.func @transform_1(%arg0: i32, %arg1: i32) -> (i32, i32) {
    %c0_i32 = arith.constant 0 : i32
    %c0_i32_0 = arith.constant 0 : i32
    return %c0_i32, %arg1 : i32, i32
  }
  func.func @transform_2(%arg0: i32, %arg1: i32) -> (i32, i32) {
    %c0_i32 = arith.constant 0 : i32
    %c0_i32_0 = arith.constant 0 : i32
    return %c0_i32, %arg1 : i32, i32
  }
  func.func @transform_3(%arg0: i32, %arg1: i32) -> (i32, i32) {
    %c0_i32 = arith.constant 0 : i32
    %c0_i32_0 = arith.constant 0 : i32
    %c0_i32_1 = arith.constant 0 : i32
    return %c0_i32, %c0_i32_0 : i32, i32
  }
  func.func @transform_4(%arg0: i32, %arg1: i32) -> (i32, i32) {
    %c0_i32 = arith.constant 0 : i32
    %c0_i32_0 = arith.constant 0 : i32
    return %c0_i32, %arg1 : i32, i32
  }
  func.func @transform_5(%arg0: i32, %arg1: i32) -> (i32, i32) {
    %c0_i32 = arith.constant 0 : i32
    return %arg0, %arg1 : i32, i32
  }
}

</mosaic_0001>

<llo_original>
// kernel: lora_linear_forward.1
$region0: #{lora_linear_forward.1}
  #allocation0 [shape = 'u32[]', space=smem, size = 0x4, offset = 0x4, fixed_abs, tag = 'smem constant byte address 0x4 - core index']
  #allocation1 [shape = 'u32[144,128]{1,0:T(1,128)}', space=vmem, size = 0x12000, scoped, tag = 'internal scratch']
  #allocation2 [shape = 'f32[32,128]{1,0:T(8,128)}', space=vmem, size = 0x4000, scoped, tag = 'scratch operand']
  %s0 = inlined_call_operand.vmem [shape: f32[32,32], index: 0, kind: input, shape index: {}]
  %s1 = inlined_call_operand.vmem [shape: f32[32,256], index: 1, kind: input, shape index: {}]
  %s2 = inlined_call_operand.vmem [shape: f32[1,256], index: 2, kind: input, shape index: {}]
  %s3 = inlined_call_operand.vmem [shape: f32[32,128], index: 3, kind: input, shape index: {}]
  %s4 = inlined_call_operand.vmem [shape: f32[128,256], index: 4, kind: input, shape index: {}]
  %s5 = inlined_call_operand.vmem [shape: f32[32,256], index: 5, kind: output, shape index: {}]
  %s6 = sld [smem:[#allocation0]]
  $region34: #{lora_linear_forward.1} parent=0
    _
  %s8 = ssub.s32 1, %s6
  %s9 = scalar_select 0, %s8, %s6
  // Predicated region
  $region2: #{lora_linear_forward.1} parent=0 // pred_check
    _
  $region3: #{lora_linear_forward.1} parent=0 // pred_check_branch
    %11 = sbr.rel (0) target = $region5
  $region4: #{lora_linear_forward.1} parent=0 // pred_region
    _
  $region5: #{lora_linear_forward.1} parent=0 // pred_fallthru
    _
  // Predicated region
  $region6: #{lora_linear_forward.1} parent=0 // pred_check
    _
  $region7: #{lora_linear_forward.1} parent=0 // pred_check_branch
    %13 = sbr.rel (0) target = $region9
  $region8: #{lora_linear_forward.1} parent=0 // pred_region
    _
  $region9: #{lora_linear_forward.1} parent=0 // pred_fallthru
    _
  // Predicated region
  $region10: #{lora_linear_forward.1} parent=0 // pred_check
    _
  $region11: #{lora_linear_forward.1} parent=0 // pred_check_branch
    %15 = sbr.rel (0) target = $region13
  $region12: #{lora_linear_forward.1} parent=0 // pred_region
    _
  $region13: #{lora_linear_forward.1} parent=0 // pred_fallthru
    _
  // Predicated region
  $region14: #{lora_linear_forward.1} parent=0 // pred_check
    _
  $region15: #{lora_linear_forward.1} parent=0 // pred_check_branch
    %17 = sbr.rel (0) target = $region17
  $region16: #{lora_linear_forward.1} parent=0 // pred_region
    _
  $region17: #{lora_linear_forward.1} parent=0 // pred_fallthru
    _
  // Predicated region
  $region18: #{lora_linear_forward.1} parent=0 // pred_check
    _
  $region19: #{lora_linear_forward.1} parent=0 // pred_check_branch
    %19 = sbr.rel (0) target = $region21
  $region20: #{lora_linear_forward.1} parent=0 // pred_region
    _
  $region21: #{lora_linear_forward.1} parent=0 // pred_fallthru
    _
  %p20 = scmp.eq.s32.totalorder 0, 0
  // Predicated region
  $region22: #{lora_linear_forward.1} parent=0 // pred_check
    %p21 = pneg %p20
  $region23: #{lora_linear_forward.1} parent=0 // pred_check_branch
    %23 = sbr.rel (%p21) target = $region25
  $region24: #{lora_linear_forward.1} parent=0 // pred_region
    %v24 = vld [vmem:[%s0] sm:$0xff]
    %v25 = vld [vmem:[%s0 + $0x8] sm:$0xff]
    %v26 = vld [vmem:[%s0 + $0x10] sm:$0xff]
    %v27 = vld [vmem:[%s0 + $0x18] sm:$0xff]
    %v28 = vld [vmem:[%s3] sm:$0xff]
    %v29 = vld [vmem:[%s3 + $0x8] sm:$0xff]
    %v30 = vld [vmem:[%s3 + $0x10] sm:$0xff]
    %v31 = vld [vmem:[%s3 + $0x18] sm:$0xff]
    %vm32 = vcmask 261120
    %v34 = vsel %vm32, %v24, 0
    %v37 = vsel %vm32, %v25, 0
    %v40 = vsel %vm32, %v26, 0
    %v43 = vsel %vm32, %v27, 0
    %45 = vmatprep.subr.mxu0 0.0
    %46 = vmatpush1.msra.mxu0 %v28
    %47 = vmatprep.subr.mxu0 0.0
    %48 = vmatpush1.msra.mxu0 %v29
    %49 = vmatprep.subr.mxu0 0.0
    %50 = vmatpush1.msra.mxu0 %v30
    %51 = vmatprep.subr.mxu0 0.0
    %52 = vmatpush1.msra.mxu0 %v31
    %53 = vmatprep.subr.mxu0 0.0
    %54 = vmatpush1.msra.mxu0 0.0
    %55 = vmatprep.subr.mxu0 0.0
    %56 = vmatpush1.msra.mxu0 0.0
    %57 = vmatprep.subr.mxu0 0.0
    %58 = vmatpush1.msra.mxu0 0.0
    %59 = vmatprep.subr.mxu0 0.0
    %60 = vmatpush1.msra.mxu0 0.0
    %61 = vmatprep.subr.mxu0 0.0
    %62 = vmatpush1.msra.mxu0 0.0
    %63 = vmatprep.subr.mxu0 0.0
    %64 = vmatpush1.msra.mxu0 0.0
    %65 = vmatprep.subr.mxu0 0.0
    %66 = vmatpush1.msra.mxu0 0.0
    %67 = vmatprep.subr.mxu0 0.0
    %68 = vmatpush1.msra.mxu0 0.0
    %69 = vmatprep.subr.mxu0 0.0
    %70 = vmatpush1.msra.mxu0 0.0
    %71 = vmatprep.subr.mxu0 0.0
    %72 = vmatpush1.msra.mxu0 0.0
    %73 = vmatprep.subr.mxu0 0.0
    %74 = vmatpush1.msra.mxu0 0.0
    %75 = vmatprep.subr.mxu0 0.0
    %76 = vmatpush1.msra.mxu0 0.0
    %77 = vmatprep.subr.mxu0 0.0
    %78 = vmatpush1.msra.mxu0 0.0
    %79 = vmatprep.subr.mxu0 0.0
    %80 = vmatpush1.msra.mxu0 0.0
    %81 = vmatprep.subr.mxu0 0.0
    %82 = vmatpush1.msra.mxu0 0.0
    %83 = vmatprep.subr.mxu0 0.0
    %84 = vmatpush1.msra.mxu0 0.0
    %85 = vmatprep.subr.mxu0 0.0
    %86 = vmatpush1.msra.mxu0 0.0
    %87 = vmatprep.subr.mxu0 0.0
    %88 = vmatpush1.msra.mxu0 0.0
    %89 = vmatprep.subr.mxu0 0.0
    %90 = vmatpush1.msra.mxu0 0.0
    %91 = vmatprep.subr.mxu0 0.0
    %92 = vmatpush1.msra.mxu0 0.0
    %93 = vmatprep.subr.mxu0 0.0
    %94 = vmatpush1.msra.mxu0 0.0
    %95 = vmatprep.subr.mxu0 0.0
    %96 = vmatpush1.msra.mxu0 0.0
    %97 = vmatprep.subr.mxu0 0.0
    %98 = vmatpush1.msra.mxu0 0.0
    %99 = vmatprep.subr.mxu0 0.0
    %100 = vmatpush1.msra.mxu0 0.0
    %101 = vmatprep.subr.mxu0 0.0
    %102 = vmatpush1.msra.mxu0 0.0
    %103 = vmatprep.subr.mxu0 0.0
    %104 = vmatpush1.msra.mxu0 0.0
    %105 = vmatprep.subr.mxu0 0.0
    %106 = vmatpush1.msra.mxu0 0.0
    %107 = vmatprep.subr.mxu0 0.0
    %108 = vmatpush1.msra.mxu0 0.0
    %109 = vmatprep.mubr.f32.mxu0 0.0
    %110 = vmatmul.mubr.f32.gmra.mrb[0].mxu0 %v34
    %v111 = vpop.f32.mrb[0].mxu0
    %v112 = vadd.f32 0.0, %v111
    %v113 = vpop.f32.mrb[0].mxu0
    %114 = vmatprep.mubr.f32.mxu0 0.0
    %115 = vmatmul.mubr.f32.gmra.mrb[0].mxu0 %v37
    %v116 = vpop.f32.mrb[0].mxu0
    %v117 = vadd.f32 0.0, %v116
    %v118 = vpop.f32.mrb[0].mxu0
    %119 = vmatprep.mubr.f32.mxu0 0.0
    %120 = vmatmul.mubr.f32.gmra.mrb[0].mxu0 %v40
    %v121 = vpop.f32.mrb[0].mxu0
    %v122 = vadd.f32 0.0, %v121
    %v123 = vpop.f32.mrb[0].mxu0
    %124 = vmatprep.mubr.f32.mxu0 0.0
    %125 = vmatmul.mubr.f32.gmra.mrb[0].mxu0 %v43
    %v126 = vpop.f32.mrb[0].mxu0
    %v127 = vadd.f32 0.0, %v126
    %v128 = vpop.f32.mrb[0].mxu0
    %129 = vdwg.mxu0
    %130 = vst [vmem:[#allocation2] sm:$0xff] %v112
    %131 = vst [vmem:[#allocation2 + $0x8] sm:$0xff] %v117
    %132 = vst [vmem:[#allocation2 + $0x10] sm:$0xff] %v122
    %133 = vst [vmem:[#allocation2 + $0x18] sm:$0xff] %v127
  $region25: #{lora_linear_forward.1} parent=0 // pred_fallthru
    _
  %v134 = vld [vmem:[%s0] sm:$0xff]
  %v135 = vld [vmem:[%s0 + $0x8] sm:$0xff]
  %v136 = vld [vmem:[%s0 + $0x10] sm:$0xff]
  %v137 = vld [vmem:[%s0 + $0x18] sm:$0xff]
  %v138 = vld [vmem:[%s1] sm:$0xff]
  %v139 = vld [vmem:[%s1 + $0x8] sm:$0xff]
  %v140 = vld [vmem:[%s1 + $0x10] sm:$0xff]
  %v141 = vld [vmem:[%s1 + $0x18] sm:$0xff]
  %v142 = vld [vmem:[%s1 + $0x20] sm:$0xff]
  %v143 = vld [vmem:[%s1 + $0x28] sm:$0xff]
  %v144 = vld [vmem:[%s1 + $0x30] sm:$0xff]
  %v145 = vld [vmem:[%s1 + $0x38] sm:$0xff]
  %v146 = vld [vmem:[#allocation2] sm:$0xff]
  %v147 = vld [vmem:[#allocation2 + $0x8] sm:$0xff]
  %v148 = vld [vmem:[#allocation2 + $0x10] sm:$0xff]
  %v149 = vld [vmem:[#allocation2 + $0x18] sm:$0xff]
  %v150 = vld [vmem:[%s4] sm:$0xff]
  %v151 = vld [vmem:[%s4 + $0x8] sm:$0xff]
  %v152 = vld [vmem:[%s4 + $0x10] sm:$0xff]
  %v153 = vld [vmem:[%s4 + $0x18] sm:$0xff]
  %v154 = vld [vmem:[%s4 + $0x20] sm:$0xff]
  %v155 = vld [vmem:[%s4 + $0x28] sm:$0xff]
  %v156 = vld [vmem:[%s4 + $0x30] sm:$0xff]
  %v157 = vld [vmem:[%s4 + $0x38] sm:$0xff]
  %v158 = vld [vmem:[%s4 + $0x40] sm:$0xff]
  %v159 = vld [vmem:[%s4 + $0x48] sm:$0xff]
  %v160 = vld [vmem:[%s4 + $0x50] sm:$0xff]
  %v161 = vld [vmem:[%s4 + $0x58] sm:$0xff]
  %v162 = vld [vmem:[%s4 + $0x60] sm:$0xff]
  %v163 = vld [vmem:[%s4 + $0x68] sm:$0xff]
  %v164 = vld [vmem:[%s4 + $0x70] sm:$0xff]
  %v165 = vld [vmem:[%s4 + $0x78] sm:$0xff]
  %v166 = vld [vmem:[%s4 + $0x80] sm:$0xff]
  %v167 = vld [vmem:[%s4 + $0x88] sm:$0xff]
  %v168 = vld [vmem:[%s4 + $0x90] sm:$0xff]
  %v169 = vld [vmem:[%s4 + $0x98] sm:$0xff]
  %v170 = vld [vmem:[%s4 + $0xa0] sm:$0xff]
  %v171 = vld [vmem:[%s4 + $0xa8] sm:$0xff]
  %v172 = vld [vmem:[%s4 + $0xb0] sm:$0xff]
  %v173 = vld [vmem:[%s4 + $0xb8] sm:$0xff]
  %v174 = vld [vmem:[%s4 + $0xc0] sm:$0xff]
  %v175 = vld [vmem:[%s4 + $0xc8] sm:$0xff]
  %v176 = vld [vmem:[%s4 + $0xd0] sm:$0xff]
  %v177 = vld [vmem:[%s4 + $0xd8] sm:$0xff]
  %v178 = vld [vmem:[%s4 + $0xe0] sm:$0xff]
  %v179 = vld [vmem:[%s4 + $0xe8] sm:$0xff]
  %v180 = vld [vmem:[%s4 + $0xf0] sm:$0xff]
  %v181 = vld [vmem:[%s4 + $0xf8] sm:$0xff]
  %182 = vmatprep.subr.mxu0 %v151
  %183 = vmatpush1.msra.mxu0 %v150
  %184 = vmatprep.subr.mxu0 %v153
  %185 = vmatpush1.msra.mxu0 %v152
  %186 = vmatprep.subr.mxu0 %v155
  %187 = vmatpush1.msra.mxu0 %v154
  %188 = vmatprep.subr.mxu0 %v157
  %189 = vmatpush1.msra.mxu0 %v156
  %190 = vmatprep.subr.mxu0 %v159
  %191 = vmatpush1.msra.mxu0 %v158
  %192 = vmatprep.subr.mxu0 %v161
  %193 = vmatpush1.msra.mxu0 %v160
  %194 = vmatprep.subr.mxu0 %v163
  %195 = vmatpush1.msra.mxu0 %v162
  %196 = vmatprep.subr.mxu0 %v165
  %197 = vmatpush1.msra.mxu0 %v164
  %198 = vmatprep.subr.mxu0 %v167
  %199 = vmatpush1.msra.mxu0 %v166
  %200 = vmatprep.subr.mxu0 %v169
  %201 = vmatpush1.msra.mxu0 %v168
  %202 = vmatprep.subr.mxu0 %v171
  %203 = vmatpush1.msra.mxu0 %v170
  %204 = vmatprep.subr.mxu0 %v173
  %205 = vmatpush1.msra.mxu0 %v172
  %206 = vmatprep.subr.mxu0 %v175
  %207 = vmatpush1.msra.mxu0 %v174
  %208 = vmatprep.subr.mxu0 %v177
  %209 = vmatpush1.msra.mxu0 %v176
  %210 = vmatprep.subr.mxu0 %v179
  %211 = vmatpush1.msra.mxu0 %v178
  %212 = vmatprep.subr.mxu0 %v181
  %213 = vmatpush1.msra.mxu0 %v180
  %214 = vmatprep.subr.mxu0 0.0
  %215 = vmatpush1.msra.mxu0 0.0
  %216 = vmatprep.subr.mxu0 0.0
  %217 = vmatpush1.msra.mxu0 0.0
  %218 = vmatprep.subr.mxu0 0.0
  %219 = vmatpush1.msra.mxu0 0.0
  %220 = vmatprep.subr.mxu0 0.0
  %221 = vmatpush1.msra.mxu0 0.0
  %222 = vmatprep.subr.mxu0 0.0
  %223 = vmatpush1.msra.mxu0 0.0
  %224 = vmatprep.subr.mxu0 0.0
  %225 = vmatpush1.msra.mxu0 0.0
  %226 = vmatprep.subr.mxu0 0.0
  %227 = vmatpush1.msra.mxu0 0.0
  %228 = vmatprep.subr.mxu0 0.0
  %229 = vmatpush1.msra.mxu0 0.0
  %230 = vmatprep.subr.mxu0 0.0
  %231 = vmatpush1.msra.mxu0 0.0
  %232 = vmatprep.subr.mxu0 0.0
  %233 = vmatpush1.msra.mxu0 0.0
  %234 = vmatprep.subr.mxu0 0.0
  %235 = vmatpush1.msra.mxu0 0.0
  %236 = vmatprep.subr.mxu0 0.0
  %237 = vmatpush1.msra.mxu0 0.0
  %238 = vmatprep.subr.mxu0 0.0
  %239 = vmatpush1.msra.mxu0 0.0
  %240 = vmatprep.subr.mxu0 0.0
  %241 = vmatpush1.msra.mxu0 0.0
  %242 = vmatprep.subr.mxu0 0.0
  %243 = vmatpush1.msra.mxu0 0.0
  %244 = vmatprep.subr.mxu0 0.0
  %245 = vmatpush1.msra.mxu0 0.0
  %246 = vmatprep.mubr.f32.mxu0 0.0
  %247 = vmatmul.mubr.f32.gmra.mrb[0].mxu0 %v146
  %v248 = vpop.f32.mrb[0].mxu0
  %v249 = vadd.f32 0.0, %v248
  %v250 = vpop.f32.mrb[0].mxu0
  %v251 = vadd.f32 0.0, %v250
  %252 = vmatprep.mubr.f32.mxu0 0.0
  %253 = vmatmul.mubr.f32.gmra.mrb[0].mxu0 %v147
  %v254 = vpop.f32.mrb[0].mxu0
  %v255 = vadd.f32 0.0, %v254
  %v256 = vpop.f32.mrb[0].mxu0
  %v257 = vadd.f32 0.0, %v256
  %258 = vmatprep.mubr.f32.mxu0 0.0
  %259 = vmatmul.mubr.f32.gmra.mrb[0].mxu0 %v148
  %v260 = vpop.f32.mrb[0].mxu0
  %v261 = vadd.f32 0.0, %v260
  %v262 = vpop.f32.mrb[0].mxu0
  %v263 = vadd.f32 0.0, %v262
  %264 = vmatprep.mubr.f32.mxu0 0.0
  %265 = vmatmul.mubr.f32.gmra.mrb[0].mxu0 %v149
  %v266 = vpop.f32.mrb[0].mxu0
  %v267 = vadd.f32 0.0, %v266
  %v268 = vpop.f32.mrb[0].mxu0
  %v269 = vadd.f32 0.0, %v268
  %270 = vdwg.mxu0
  %vm271 = vcmask 261120
  %v273 = vsel %vm271, %v134, 0
  %v276 = vsel %vm271, %v135, 0
  %v279 = vsel %vm271, %v136, 0
  %v282 = vsel %vm271, %v137, 0
  %284 = vmatprep.subr.mxu0 %v139
  %285 = vmatpush1.msra.mxu0 %v138
  %286 = vmatprep.subr.mxu0 %v141
  %287 = vmatpush1.msra.mxu0 %v140
  %288 = vmatprep.subr.mxu0 %v143
  %289 = vmatpush1.msra.mxu0 %v142
  %290 = vmatprep.subr.mxu0 %v145
  %291 = vmatpush1.msra.mxu0 %v144
  %292 = vmatprep.subr.mxu0 0.0
  %293 = vmatpush1.msra.mxu0 0.0
  %294 = vmatprep.subr.mxu0 0.0
  %295 = vmatpush1.msra.mxu0 0.0
  %296 = vmatprep.subr.mxu0 0.0
  %297 = vmatpush1.msra.mxu0 0.0
  %298 = vmatprep.subr.mxu0 0.0
  %299 = vmatpush1.msra.mxu0 0.0
  %300 = vmatprep.subr.mxu0 0.0
  %301 = vmatpush1.msra.mxu0 0.0
  %302 = vmatprep.subr.mxu0 0.0
  %303 = vmatpush1.msra.mxu0 0.0
  %304 = vmatprep.subr.mxu0 0.0
  %305 = vmatpush1.msra.mxu0 0.0
  %306 = vmatprep.subr.mxu0 0.0
  %307 = vmatpush1.msra.mxu0 0.0
  %308 = vmatprep.subr.mxu0 0.0
  %309 = vmatpush1.msra.mxu0 0.0
  %310 = vmatprep.subr.mxu0 0.0
  %311 = vmatpush1.msra.mxu0 0.0
  %312 = vmatprep.subr.mxu0 0.0
  %313 = vmatpush1.msra.mxu0 0.0
  %314 = vmatprep.subr.mxu0 0.0
  %315 = vmatpush1.msra.mxu0 0.0
  %316 = vmatprep.subr.mxu0 0.0
  %317 = vmatpush1.msra.mxu0 0.0
  %318 = vmatprep.subr.mxu0 0.0
  %319 = vmatpush1.msra.mxu0 0.0
  %320 = vmatprep.subr.mxu0 0.0
  %321 = vmatpush1.msra.mxu0 0.0
  %322 = vmatprep.subr.mxu0 0.0
  %323 = vmatpush1.msra.mxu0 0.0
  %324 = vmatprep.subr.mxu0 0.0
  %325 = vmatpush1.msra.mxu0 0.0
  %326 = vmatprep.subr.mxu0 0.0
  %327 = vmatpush1.msra.mxu0 0.0
  %328 = vmatprep.subr.mxu0 0.0
  %329 = vmatpush1.msra.mxu0 0.0
  %330 = vmatprep.subr.mxu0 0.0
  %331 = vmatpush1.msra.mxu0 0.0
  %332 = vmatprep.subr.mxu0 0.0
  %333 = vmatpush1.msra.mxu0 0.0
  %334 = vmatprep.subr.mxu0 0.0
  %335 = vmatpush1.msra.mxu0 0.0
  %336 = vmatprep.subr.mxu0 0.0
  %337 = vmatpush1.msra.mxu0 0.0
  %338 = vmatprep.subr.mxu0 0.0
  %339 = vmatpush1.msra.mxu0 0.0
  %340 = vmatprep.subr.mxu0 0.0
  %341 = vmatpush1.msra.mxu0 0.0
  %342 = vmatprep.subr.mxu0 0.0
  %343 = vmatpush1.msra.mxu0 0.0
  %344 = vmatprep.subr.mxu0 0.0
  %345 = vmatpush1.msra.mxu0 0.0
  %346 = vmatprep.subr.mxu0 0.0
  %347 = vmatpush1.msra.mxu0 0.0
  %348 = vmatprep.mubr.f32.mxu0 0.0
  %349 = vmatmul.mubr.f32.gmra.mrb[0].mxu0 %v273
  %v350 = vpop.f32.mrb[0].mxu0
  %v351 = vadd.f32 %v249, %v350
  %v352 = vpop.f32.mrb[0].mxu0
  %v353 = vadd.f32 %v251, %v352
  %354 = vmatprep.mubr.f32.mxu0 0.0
  %355 = vmatmul.mubr.f32.gmra.mrb[0].mxu0 %v276
  %v356 = vpop.f32.mrb[0].mxu0
  %v357 = vadd.f32 %v255, %v356
  %v358 = vpop.f32.mrb[0].mxu0
  %v359 = vadd.f32 %v257, %v358
  %360 = vmatprep.mubr.f32.mxu0 0.0
  %361 = vmatmul.mubr.f32.gmra.mrb[0].mxu0 %v279
  %v362 = vpop.f32.mrb[0].mxu0
  %v363 = vadd.f32 %v261, %v362
  %v364 = vpop.f32.mrb[0].mxu0
  %v365 = vadd.f32 %v263, %v364
  %366 = vmatprep.mubr.f32.mxu0 0.0
  %367 = vmatmul.mubr.f32.gmra.mrb[0].mxu0 %v282
  %v368 = vpop.f32.mrb[0].mxu0
  %v369 = vadd.f32 %v267, %v368
  %v370 = vpop.f32.mrb[0].mxu0
  %v371 = vadd.f32 %v269, %v370
  %372 = vdwg.mxu0
  %v373 = vld [vmem:[%s2] sm:$0x3]
  %v375 = vlaneseq
  %v376 = vshrl.u32 %v375, 7
  %v377 = vsub.s32 0, %v376
  %v378 = vrot.slane %v373, %v377
  %v379 = vlaneseq
  %v380 = vshrl.u32 %v379, 7
  %v381 = vsub.s32 1, %v380
  %v382 = vrot.slane %v373, %v381
  %v385 = vadd.f32 %v351, %v378
  %v386 = vadd.f32 %v353, %v382
  %v387 = vadd.f32 %v357, %v378
  %v388 = vadd.f32 %v359, %v382
  %v389 = vadd.f32 %v363, %v378
  %v390 = vadd.f32 %v365, %v382
  %v391 = vadd.f32 %v369, %v378
  %v392 = vadd.f32 %v371, %v382
  %393 = vst [vmem:[%s5] sm:$0xff] %v385
  %394 = vst [vmem:[%s5 + $0x8] sm:$0xff] %v386
  %395 = vst [vmem:[%s5 + $0x10] sm:$0xff] %v387
  %396 = vst [vmem:[%s5 + $0x18] sm:$0xff] %v388
  %397 = vst [vmem:[%s5 + $0x20] sm:$0xff] %v389
  %398 = vst [vmem:[%s5 + $0x28] sm:$0xff] %v390
  %399 = vst [vmem:[%s5 + $0x30] sm:$0xff] %v391
  %400 = vst [vmem:[%s5 + $0x38] sm:$0xff] %v392
  // Predicated region
  $region26: #{lora_linear_forward.1} parent=0 // pred_check
    _
  $region27: #{lora_linear_forward.1} parent=0 // pred_check_branch
    %402 = sbr.rel (0) target = $region29
  $region28: #{lora_linear_forward.1} parent=0 // pred_region
    _
  $region29: #{lora_linear_forward.1} parent=0 // pred_fallthru
    _
  // Predicated region
  $region30: #{lora_linear_forward.1} parent=0 // pred_check
    _
  $region31: #{lora_linear_forward.1} parent=0 // pred_check_branch
    %404 = sbr.rel (0) target = $region33
  $region32: #{lora_linear_forward.1} parent=0 // pred_region
    _
  $region33: #{lora_linear_forward.1} parent=0 // pred_fallthru
    _

</llo_original>
